<compile_context>
chip_gen: v5e
topology: v5e:2x2
jax: 0.10.0
libtpu: 0.0.40
codegen_flags: <defaults>
</compile_context>

<pallas_src>
import jax
import jax.numpy as jnp
from jax.experimental import pallas as pl
from jax.experimental.pallas import tpu as pltpu


def _round_up(a, b):
    return ((a + b - 1) // b) * b


def _vmem_capacity_bytes():
    """Physical VMEM of the attached TPU; conservative (v7x) fallback."""
    try:
        cap = int(getattr(pltpu.get_tpu_info(), "vmem_capacity_bytes"))
        if cap > 0:
            return cap
    except Exception:
        pass
    return 64 * 1024 * 1024


def _make_colsum_kernel(n_rows, tile_rows, tiles_per_core, needs_tail_mask):
    """Stage 1: per-core partial column sums of the (n_rows, d_in) patch matrix."""

    n_full_tiles = n_rows // tile_rows  # tiles lying entirely inside [0, n_rows)

    def kernel(x_ref, psum_ref):
        c = pl.program_id(0)  # core-split index ("parallel")
        i = pl.program_id(1)  # patch-tile index within this split ("arbitrary")

        @pl.when(i == 0)
        def _init():
            psum_ref[...] = jnp.zeros_like(psum_ref)

        x = x_ref[...].astype(jnp.float32)          # (tile_rows, d_in)
        g = c * tiles_per_core + i                  # global tile index

        def _accum(tile):
            # Column sum on the VPU/XLU (kernel is DMA-bound; MXU not needed).
            s = jnp.sum(tile, axis=0, keepdims=True)        # (1, d_in)
            psum_ref[...] += s.reshape(psum_ref.shape)

        if needs_tail_mask:
            @pl.when(g < n_full_tiles)
            def _full():
                _accum(x)

            @pl.when(g >= n_full_tiles)
            def _tail():
                # Rows at/after n_rows are out-of-bounds garbage (possibly
                # NaN): zero them explicitly before accumulating.
                row = (jax.lax.broadcasted_iota(jnp.int32, (x.shape[0], 1), 0)
                       + g * tile_rows)
                _accum(jnp.where(row < n_rows, x, jnp.float32(0.0)))
        else:
            _accum(x)

    return kernel


def _make_head_kernel(n_true, n_classes):
    """Stage 2: mean -> linear encoder -> fc -> masked softmax (runs once)."""
    inv_n = 1.0 / float(n_true)

    def kernel(psum_ref, w_enc_ref, b_enc_ref, w_fc_ref, b_fc_ref, out_ref):
        # Combine the per-core partial sums, divide by the *true* patch count.
        bag_x = jnp.sum(psum_ref[...], axis=0) * jnp.float32(inv_n)     # (1, d_in)
        # Linear encoder applied to the mean patch (== mean of encodings).
        feats = jnp.dot(bag_x, w_enc_ref[...],
                        preferred_element_type=jnp.float32) + b_enc_ref[...]
        # Classifier head.
        logits = jnp.dot(feats, w_fc_ref[...],
                         preferred_element_type=jnp.float32) + b_fc_ref[...]
        # Mask zero-padded class lanes, then numerically stable softmax.
        lane = jax.lax.broadcasted_iota(jnp.int32, logits.shape, 1)
        logits = jnp.where(lane < n_classes, logits, jnp.float32(-1e30))
        m = jnp.max(logits, axis=-1, keepdims=True)
        e = jnp.exp(logits - m)
        out_ref[...] = (e / jnp.sum(e, axis=-1, keepdims=True)).astype(out_ref.dtype)

    return kernel


def wsi_mil_forward(x_nchw, w_enc, b_enc, w_fc, b_fc):
    """x_nchw: (N, C, H, W) patches of one WSI.  Returns (1, n_classes) probs."""
    n = x_nchw.shape[0]
    d_in = x_nchw.shape[1] * x_nchw.shape[2] * x_nchw.shape[3]
    feature_dim, n_classes = w_fc.shape
    assert w_enc.shape == (d_in, feature_dim)

    # Flatten is a contiguous reshape: no HBM copy.  x is streamed as-is
    # (no host-side row/column padding of the bag -> ~1x traffic on the
    # dominant stream).  The lane dim of the x block equals the full d_in,
    # which Pallas accepts even when d_in % 128 != 0.
    x_flat = x_nchw.reshape(n, d_in)
    itemsize = jnp.dtype(x_flat.dtype).itemsize
    sublane = {4: 8, 2: 16, 1: 32}.get(itemsize, 8)

    # ---- per-generation tile budget & VMEM limit -------------------------
    vmem_cap = _vmem_capacity_bytes()
    if vmem_cap >= 100 * 1024 * 1024:      # v5e / v6e: 128 MiB physical VMEM
        x_buf_budget = 24 * 1024 * 1024    # per x buffer (double-buffered)
        vmem_limit = 96 * 1024 * 1024
    else:                                  # v7x: 64 MiB physical VMEM
        x_buf_budget = 12 * 1024 * 1024
        vmem_limit = 48 * 1024 * 1024

    # Tiny bags (< one sublane group) get a sliver of zero padding (negligible).
    if n < sublane:
        x_flat = jnp.zeros((sublane, d_in), x_flat.dtype).at[:n].set(x_flat)
    n_rows = x_flat.shape[0]

    bytes_per_row = max(d_in * itemsize, 1)
    tile_rows = x_buf_budget // bytes_per_row
    tile_rows = max(sublane, (tile_rows // sublane) * sublane)
    tile_rows = min(tile_rows, (n_rows // sublane) * sublane)  # never exceed bag

    total_tiles = -(-n_rows // tile_rows)                      # ceil
    n_split = 2 if total_tiles >= 2 else 1                     # both TCs on v7x
    tiles_per_core = -(-total_tiles // n_split)
    last_block = total_tiles - 1
    needs_tail_mask = (n_rows % tile_rows != 0) or (n_split * tiles_per_core > total_tiles)

    # ---- stage 1: streaming per-core column sums --------------------------
    colsum = pl.pallas_call(
        _make_colsum_kernel(n_rows, tile_rows, tiles_per_core, needs_tail_mask),
        out_shape=jax.ShapeDtypeStruct((n_split, 1, d_in), jnp.float32),
        grid_spec=pltpu.PrefetchScalarGridSpec(
            num_scalar_prefetch=0,
            grid=(n_split, tiles_per_core),
            in_specs=[
                pl.BlockSpec(
                    (tile_rows, d_in),
                    # Clamp so duplicated trailing tiles (fully masked in the
                    # kernel) never DMA out of bounds.
                    lambda c, i: (jnp.minimum(c * tiles_per_core + i, last_block), 0),
                ),
            ],
            out_specs=pl.BlockSpec((1, 1, d_in), lambda c, i: (c, 0, 0)),
        ),
        compiler_params=pltpu.CompilerParams(
            dimension_semantics=("parallel", "arbitrary"),
            vmem_limit_bytes=vmem_limit,
        ),
        cost_estimate=pl.CostEstimate(
            flops=int(n_rows) * int(d_in),
            transcendentals=0,
            bytes_accessed=int(itemsize) * int(n_rows) * int(d_in)
            + 4 * int(n_split) * int(d_in),
        ),
    )(x_flat)

    # ---- stage 2: mean -> encoder -> fc -> softmax (single shot) ----------
    f_pad = _round_up(feature_dim, 128)
    c_pad = _round_up(n_classes, 128)
    w_enc_p = jnp.zeros((d_in, f_pad), jnp.float32).at[:, :feature_dim].set(
        w_enc.astype(jnp.float32))
    b_enc_p = jnp.zeros((1, f_pad), jnp.float32).at[:, :feature_dim].set(
        b_enc.reshape(1, -1).astype(jnp.float32))
    w_fc_p = jnp.zeros((f_pad, c_pad), jnp.float32).at[:feature_dim, :n_classes].set(
        w_fc.astype(jnp.float32))
    b_fc_p = jnp.zeros((1, c_pad), jnp.float32).at[:, :n_classes].set(
        b_fc.reshape(1, -1).astype(jnp.float32))

    # TODO(synk): a real nonlinear encoder (ResNet/ViT) invalidates the
    # linearity shortcut and must encode patches ahead of this stage; for a
    # huge synthetic d_in (e.g. 3*224*224) w_enc should also be tiled over
    # its K axis here instead of being loaded whole into VMEM.
    out_pad = pl.pallas_call(
        _make_head_kernel(n, n_classes),
        out_shape=jax.ShapeDtypeStruct((1, c_pad), jnp.float32),
        compiler_params=pltpu.CompilerParams(vmem_limit_bytes=vmem_limit),
    )(colsum, w_enc_p, b_enc_p, w_fc_p, b_fc_p)

    return out_pad[:, :n_classes]


if __name__ == "__main__":
    # Small shapes consistent with the forward: N patches of (3, H, W),
    # synthetic linear encoder feature_dim=32, n_classes=4.
    N, C_IN, H, W = 8, 3, 16, 16
    FEATURE_DIM = 32
    N_CLASSES = 4
    D_IN = C_IN * H * W

    key = jax.random.PRNGKey(0)
    k_x, k_we, k_be, k_wf, k_bf = jax.random.split(key, 5)

    x = jax.random.normal(k_x, (N, C_IN, H, W), dtype=jnp.float32)

    # Synthetic linear patch-encoder parameters (stand-in for ResNet/ViT).
    w_enc = jax.random.normal(k_we, (D_IN, FEATURE_DIM), dtype=jnp.float32) * 0.02
    b_enc = jax.random.normal(k_be, (1, FEATURE_DIM), dtype=jnp.float32) * 0.02
    # nn.Linear(feature_dim, n_classes): torch weight (C, F), stored transposed.
    w_fc = jax.random.normal(k_wf, (FEATURE_DIM, N_CLASSES), dtype=jnp.float32) * 0.1
    b_fc = jax.random.normal(k_bf, (1, N_CLASSES), dtype=jnp.float32) * 0.1

    probs = wsi_mil_forward(x, w_enc, b_enc, w_fc, b_fc)
    probs = jax.block_until_ready(probs)

    # Reference in plain JAX (same math as the PyTorch module).
    feats_ref = x.reshape(N, D_IN) @ w_enc + b_enc
    bag_ref = feats_ref.mean(axis=0, keepdims=True)
    logits_ref = bag_ref @ w_fc + b_fc
    probs_ref = jax.nn.softmax(logits_ref, axis=-1)

    assert probs.shape == (1, N_CLASSES)
    assert jnp.allclose(probs, probs_ref, atol=1e-5), (probs, probs_ref)
    assert jnp.allclose(jnp.sum(probs), 1.0, atol=1e-5)

    print("KERNEL_OK")
</pallas_src>

<mosaic_0001>
module attributes {stable_mosaic.version = 11 : i64} {
  func.func @kernel(%arg0: i32, %arg1: i32, %arg2: memref<8x768xf32, #tpu.memory_space<vmem>>, %arg3: memref<1x1x768xf32, #tpu.memory_space<vmem>>) attributes {dimension_semantics = [#tpu.dimension_semantics<parallel>, #tpu.dimension_semantics<arbitrary>], iteration_bounds = array<i64: 1, 1>, scalar_prefetch = 0 : i64, scratch_operands = 0 : i64, tpu.core_type = #tpu.core_type<tc>, window_params = [{transform_indices = @transform_0, window_bounds = array<i64: 8, 768>}, {transform_indices = @transform_1, window_bounds = array<i64: 1, 1, 768>}]} {
    %c0_i32 = arith.constant 0 : i32
    %0 = arith.cmpi eq, %arg1, %c0_i32 : i32
    %1 = arith.extui %0 : i1 to i32
    %c0_i32_0 = arith.constant 0 : i32
    %2 = arith.cmpi ne, %1, %c0_i32_0 : i32
    scf.if %2 {
      %cst_8 = arith.constant 0.000000e+00 : f32
      %10 = vector.broadcast %cst_8 : f32 to vector<1x1x768xf32>
      %c0_9 = arith.constant 0 : index
      %c0_10 = arith.constant 0 : index
      %c0_11 = arith.constant 0 : index
      %11 = vector.load %arg3[%c0_9, %c0_10, %c0_11] : memref<1x1x768xf32, #tpu.memory_space<vmem>>, vector<1x1x768xf32>
      tpu.vector_store %arg3[%c0_9, %c0_10, %c0_11], %10 {strides = array<i32>} : memref<1x1x768xf32, #tpu.memory_space<vmem>>, vector<1x1x768xf32>,
    } else {
    }
    %c0 = arith.constant 0 : index
    %c0_1 = arith.constant 0 : index
    %3 = vector.load %arg2[%c0, %c0_1] : memref<8x768xf32, #tpu.memory_space<vmem>>, vector<8x768xf32>
    %cst = arith.constant dense<0.000000e+00> : vector<768xf32>
    %4 = vector.multi_reduction <add>, %3, %cst [0] : vector<8x768xf32> to vector<768xf32>
    %5 = vector.shape_cast %4 : vector<768xf32> to vector<1x768xf32>
    %c0_2 = arith.constant 0 : index
    %c0_3 = arith.constant 0 : index
    %c0_4 = arith.constant 0 : index
    %6 = vector.load %arg3[%c0_2, %c0_3, %c0_4] : memref<1x1x768xf32, #tpu.memory_space<vmem>>, vector<1x1x768xf32>
    %7 = vector.shape_cast %5 : vector<1x768xf32> to vector<1x1x768xf32>
    %8 = arith.addf %6, %7 : vector<1x1x768xf32>
    %c0_5 = arith.constant 0 : index
    %c0_6 = arith.constant 0 : index
    %c0_7 = arith.constant 0 : index
    %9 = vector.load %arg3[%c0_5, %c0_6, %c0_7] : memref<1x1x768xf32, #tpu.memory_space<vmem>>, vector<1x1x768xf32>
    tpu.vector_store %arg3[%c0_5, %c0_6, %c0_7], %8 {strides = array<i32>} : memref<1x1x768xf32, #tpu.memory_space<vmem>>, vector<1x1x768xf32>,
    return
  }
  func.func @transform_0(%arg0: i32, %arg1: i32) -> (i32, i32) {
    %c1_i32 = arith.constant 1 : i32
    %0 = arith.muli %arg0, %c1_i32 : i32
    %1 = arith.addi %0, %arg1 : i32
    %c0_i32 = arith.constant 0 : i32
    %2 = arith.minsi %1, %c0_i32 : i32
    %c0_i32_0 = arith.constant 0 : i32
    %c0_i32_1 = arith.constant 0 : i32
    return %2, %c0_i32_0 : i32, i32
  }
  func.func @transform_1(%arg0: i32, %arg1: i32) -> (i32, i32, i32) {
    %c0_i32 = arith.constant 0 : i32
    %c0_i32_0 = arith.constant 0 : i32
    %c0_i32_1 = arith.constant 0 : i32
    return %arg0, %c0_i32, %c0_i32_0 : i32, i32, i32
  }
}

</mosaic_0001>

<llo_original>
// kernel: tpu_custom_call.1
$region0: #{tpu_custom_call.1}
  #allocation0 [shape = 'u32[]', space=smem, size = 0x4, offset = 0x4, fixed_abs, tag = 'smem constant byte address 0x4 - core index']
  #allocation1 [shape = 'u32[72,128]{1,0:T(1,128)}', space=vmem, size = 0x9000, scoped, tag = 'internal scratch']
  %s0 = inlined_call_operand.hbm [shape: f32[8,768], index: 0, kind: input, shape index: {}]
  %s1 = inlined_call_operand.hbm [shape: f32[1,1,768], index: 1, kind: output, shape index: {}]
  %s2 = sld [smem:[#allocation0]]
  $region22: #{tpu_custom_call.1} parent=0
    _
  %s4 = ssub.s32 1, %s2
  %s5 = scalar_select 0, %s4, %s2
  $region1: #{tpu_custom_call.1} parent=0
    #allocation2 [shape = 'u8[24576]{0}', space=vmem, size = 0x6000, scoped, tag = 'input window, operand 0, single buffered']
    #allocation3 [shape = 's32[1]{0}', space=sflag, size = 0x4, scoped, tag = 'scoped memory for tpu_custom_call.1']
    #allocation4 [shape = 's32[1]{0}', space=sflag, size = 0x4, scoped, tag = 'scoped memory for tpu_custom_call.1']
    #allocation5 [shape = 'u8[3072]{0}', space=vmem, size = 0xc00, scoped, tag = 'output window, operand 0, single buffered']
    %6 = vsyncpa [#allocation3], 0
    %7 = vsyncpa [#allocation4], 0
    // Predicated region
    $region2: #{tpu_custom_call.1} parent=1 // pred_check
      _
    $region3: #{tpu_custom_call.1} parent=1 // pred_check_branch
      %9 = sbr.rel (0) target = $region5
    $region4: #{tpu_custom_call.1} parent=1 // pred_region
      %s10 = sadd.s32 0, 0
      %p11 = scmp.lt.s32.totalorder %s10, 0
      %s12 = scalar_select %p11, %s10, 0
      %14 = vsyncadd [#allocation3], 0
      %s15 = smul.addr %s12, 6
      %s16 = smul.addr %s15, 8
      %s17 = scalar_lea.hbm %s0, %s16
      %s19 = sshll.u32 %s17, 4
      %s20 = int_to_ptr.hbm [resolvable:$true] %s19
      %s21 = sshll.u32 [#allocation2], 4
      %s22 = int_to_ptr.vmem [resolvable:$true] %s21
      %24 = dma.hbm_to_vmem [thread:$0]  %s20, 768, %s22, [#allocation3]
    $region5: #{tpu_custom_call.1} parent=1 // pred_fallthru
      _
    // Predicated region
    $region6: #{tpu_custom_call.1} parent=1 // pred_check
      _
    $region7: #{tpu_custom_call.1} parent=1 // pred_check_branch
      %26 = sbr.rel (0) target = $region9
    $region8: #{tpu_custom_call.1} parent=1 // pred_region
      %28 = dma.done [#allocation3], 768
    $region9: #{tpu_custom_call.1} parent=1 // pred_fallthru
      _
    %s29 = sadd.s32 0, 0
    %p30 = scmp.lt.s32.totalorder %s29, 0
    %s31 = scalar_select %p30, %s29, 0
    %p32 = scmp.eq.s32.totalorder 0, 0
    // Predicated region
    $region10: #{tpu_custom_call.1} parent=1 // pred_check
      %p33 = pneg %p32
    $region11: #{tpu_custom_call.1} parent=1 // pred_check_branch
      %35 = sbr.rel (%p33) target = $region13
    $region12: #{tpu_custom_call.1} parent=1 // pred_region
      %v36 = vlaneseq
      %vm37 = vcmp.ge.s32.totalorder %v36, 0
      %vm38 = vcmp.lt.s32.totalorder %v36, 768
      %vm39 = vmand %vm37, %vm38
      %40 = vst.msk [vmem:[#allocation5] sm:$0x3f] %vm39, 0.0
    $region13: #{tpu_custom_call.1} parent=1 // pred_fallthru
      _
    %v41 = vld [vmem:[#allocation2] sm:$0xff]
    %v42 = vld [vmem:[#allocation2 + $0x8] sm:$0xff]
    %v43 = vld [vmem:[#allocation2 + $0x10] sm:$0xff]
    %v44 = vld [vmem:[#allocation2 + $0x18] sm:$0xff]
    %v45 = vld [vmem:[#allocation2 + $0x20] sm:$0xff]
    %v46 = vld [vmem:[#allocation2 + $0x28] sm:$0xff]
    %v47 = vrot.slane %v41, 4
    %v48 = vadd.f32 %v41, %v47
    %v49 = vrot.slane %v48, 2
    %v50 = vadd.f32 %v48, %v49
    %v51 = vrot.slane %v50, 1
    %v52 = vadd.f32 %v50, %v51
    %v53 = vrot.slane %v42, 4
    %v54 = vadd.f32 %v42, %v53
    %v55 = vrot.slane %v54, 2
    %v56 = vadd.f32 %v54, %v55
    %v57 = vrot.slane %v56, 1
    %v58 = vadd.f32 %v56, %v57
    %v59 = vrot.slane %v43, 4
    %v60 = vadd.f32 %v43, %v59
    %v61 = vrot.slane %v60, 2
    %v62 = vadd.f32 %v60, %v61
    %v63 = vrot.slane %v62, 1
    %v64 = vadd.f32 %v62, %v63
    %v65 = vrot.slane %v44, 4
    %v66 = vadd.f32 %v44, %v65
    %v67 = vrot.slane %v66, 2
    %v68 = vadd.f32 %v66, %v67
    %v69 = vrot.slane %v68, 1
    %v70 = vadd.f32 %v68, %v69
    %v71 = vrot.slane %v45, 4
    %v72 = vadd.f32 %v45, %v71
    %v73 = vrot.slane %v72, 2
    %v74 = vadd.f32 %v72, %v73
    %v75 = vrot.slane %v74, 1
    %v76 = vadd.f32 %v74, %v75
    %v77 = vrot.slane %v46, 4
    %v78 = vadd.f32 %v46, %v77
    %v79 = vrot.slane %v78, 2
    %v80 = vadd.f32 %v78, %v79
    %v81 = vrot.slane %v80, 1
    %v82 = vadd.f32 %v80, %v81
    %v83 = vld [vmem:[#allocation5] sm:$0x3f]
    %v90 = vrot.slane %v58, 7
    %v91 = vrot.slane %v64, 6
    %v92 = vrot.slane %v70, 5
    %v93 = vrot.slane %v76, 4
    %v94 = vrot.slane %v82, 3
    %vm95 = vcmask 1040384
    %v96 = vsel %vm95, %v52, %v90
    %vm97 = vcmask 1041408
    %v98 = vsel %vm97, %v96, %v91
    %vm99 = vcmask 1043459
    %v100 = vsel %vm99, %v92, %v93
    %vm101 = vcmask 1044483
    %v102 = vsel %vm101, %v100, %v94
    %vm103 = vcmask 1042432
    %v104 = vsel %vm103, %v98, %v102
    %v106 = vadd.f32 %v83, %v104
    %v107 = vlaneseq
    %vm108 = vcmp.ge.s32.totalorder %v107, 0
    %vm109 = vcmp.lt.s32.totalorder %v107, 768
    %vm110 = vmand %vm108, %vm109
    %111 = vst.msk [vmem:[#allocation5] sm:$0x3f] %vm110, %v106
    // Predicated region
    $region14: #{tpu_custom_call.1} parent=1 // pred_check
      _
    $region15: #{tpu_custom_call.1} parent=1 // pred_check_branch
      %113 = sbr.rel (0) target = $region17
    $region16: #{tpu_custom_call.1} parent=1 // pred_region
      %115 = vsyncadd [#allocation4], 0
      %s117 = sshll.u32 [#allocation5], 4
      %s118 = int_to_ptr.vmem [resolvable:$true] %s117
      %s119 = sshll.u32 %s1, 4
      %s120 = int_to_ptr.hbm [resolvable:$true] %s119
      %122 = dma.vmem_to_hbm [thread:$0]  %s118, 96, %s120, [#allocation4]
    $region17: #{tpu_custom_call.1} parent=1 // pred_fallthru
      _
    // Predicated region
    $region18: #{tpu_custom_call.1} parent=1 // pred_check
      _
    $region19: #{tpu_custom_call.1} parent=1 // pred_check_branch
      %124 = sbr.rel (0) target = $region21
    $region20: #{tpu_custom_call.1} parent=1 // pred_region
      %126 = dma.done [#allocation4], 96
    $region21: #{tpu_custom_call.1} parent=1 // pred_fallthru
      _
    %127 = vsyncpa [#allocation3], 1
    %128 = vsyncpa [#allocation4], 1

</llo_original>
